<compile_context>
chip_gen: v5e
topology: v5e:2x2
jax: 0.10.0
libtpu: 0.0.40
codegen_flags: <defaults>
</compile_context>

<pallas_src>
import jax
import jax.numpy as jnp
from jax.experimental import pallas as pl
from jax.experimental.pallas import tpu as pltpu

OUT_PAD = 8  # fc2 outputs (3) zero-padded to 8 sublane rows


def iris_mlp_kernel(xt_ref, w1t_ref, b1_ref, w2t_ref, b2_ref, o_ref):
    # xt:  [4, TB]   (features on sublanes, batch on lanes)
    # w1t: [16, 4]   b1: [16, 1]
    # w2t: [8, 16]   b2: [8, 1]     (rows 3..7 are zero pad)
    # o:   [8, TB]
    xt = xt_ref[...]
    w1t = w1t_ref[...]
    b1 = b1_ref[...]
    w2t = w2t_ref[...]
    b2 = b2_ref[...]

    in_dim = xt.shape[0]      # 4
    tb = xt.shape[1]          # TILE_B
    hid = w1t.shape[0]        # 16

    # Layer 1 (4 -> 16), transposed: h^T[j, b] = sum_k w1t[j, k] * x^T[k, b] + b1[j]
    # K=4 is far too small for the MXU -> unrolled VPU broadcast-FMA.
    h = jnp.broadcast_to(b1, (hid, tb))
    for k in range(in_dim):                       # static unrolled loop
        h = h + w1t[:, k:k + 1] * xt[k:k + 1, :]  # sublane slice of x^T: cheap
    h = jnp.maximum(h, 0.0)                       # relu

    # Layer 2 (16 -> 3, padded to 8 rows) on the MXU; bias in the epilogue.
    y = jnp.dot(w2t, h, preferred_element_type=jnp.float32) + b2
    o_ref[...] = y.astype(o_ref.dtype)


def iris_forward(x, w1, b1, w2, b2, *, tile_b=4096):
    """x: [B, 4], w1: [4, 16], b1: [16]/[1,16], w2: [16, 3], b2: [3]/[1,3]."""
    B = x.shape[0]
    in_dim, hid_dim = w1.shape          # 4, 16
    out_dim = w2.shape[1]               # 3

    # Parameters in transposed layout (one-time, tiny).
    w1t = jnp.asarray(w1, jnp.float32).T                              # (16, 4)
    b1c = jnp.asarray(b1, jnp.float32).reshape(hid_dim, 1)            # (16, 1)
    w2t = (jnp.zeros((OUT_PAD, hid_dim), jnp.float32)
           .at[:out_dim, :].set(jnp.asarray(w2, jnp.float32).T))      # (8, 16)
    b2c = (jnp.zeros((OUT_PAD, 1), jnp.float32)
           .at[:out_dim, 0].set(jnp.asarray(b2, jnp.float32).reshape(-1)))  # (8, 1)

    # Batch tile: multiple of 128 lanes; default 4096 rows/step to amortize
    # per-grid-step overhead (VMEM per tile is only ~0.4 MB double-buffered).
    tile_b = max(128, (tile_b // 128) * 128)
    pad_b = ((B + 127) // 128) * 128
    if pad_b <= tile_b:
        tb = pad_b
    else:
        tb = tile_b
        pad_b = ((B + tb - 1) // tb) * tb

    # x^T, zero-padded along batch: (4, pad_b), batch on lanes (dense DMA).
    xt = jnp.zeros((in_dim, pad_b), jnp.float32).at[:, :B].set(
        jnp.asarray(x, jnp.float32).T)

    grid = (pad_b // tb,)
    flops = 2 * pad_b * (in_dim * hid_dim + hid_dim * OUT_PAD)
    bytes_accessed = (pad_b * (in_dim + OUT_PAD) * 4
                      + (w1t.size + b1c.size + w2t.size + b2c.size) * 4)

    out_t = pl.pallas_call(
        iris_mlp_kernel,
        out_shape=jax.ShapeDtypeStruct((OUT_PAD, pad_b), jnp.float32),
        grid_spec=pl.GridSpec(
            grid=grid,
            in_specs=[
                pl.BlockSpec((in_dim, tb), lambda i: (0, i)),       # x^T: tiled over batch
                pl.BlockSpec((hid_dim, in_dim), lambda i: (0, 0)),  # w1^T: resident
                pl.BlockSpec((hid_dim, 1), lambda i: (0, 0)),       # b1: resident
                pl.BlockSpec((OUT_PAD, hid_dim), lambda i: (0, 0)), # w2^T (padded): resident
                pl.BlockSpec((OUT_PAD, 1), lambda i: (0, 0)),       # b2 (padded): resident
            ],
            out_specs=pl.BlockSpec((OUT_PAD, tb), lambda i: (0, i)),
        ),
        compiler_params=pltpu.CompilerParams(
            dimension_semantics=("parallel",),   # batch tiles shard across TCs on v7x
        ),
        cost_estimate=pl.CostEstimate(
            flops=flops, transcendentals=0, bytes_accessed=bytes_accessed),
    )(xt, w1t, b1c, w2t, b2c)

    # Tiny (3, B) slice + transpose back to the PyTorch [B, 3] convention.
    return out_t[:out_dim, :B].T


def init_params(key):
    """Deterministic init matching nn.Linear(4,16) and nn.Linear(16,3)."""
    k1, k2, k3, k4 = jax.random.split(key, 4)
    # PyTorch Linear default init: U(-1/sqrt(fan_in), 1/sqrt(fan_in))
    lim1 = 1.0 / jnp.sqrt(4.0)
    lim2 = 1.0 / jnp.sqrt(16.0)
    w1 = jax.random.uniform(k1, (4, 16), jnp.float32, -lim1, lim1)   # fc1.weight.T
    b1 = jax.random.uniform(k2, (16,), jnp.float32, -lim1, lim1)     # fc1.bias
    w2 = jax.random.uniform(k3, (16, 3), jnp.float32, -lim2, lim2)   # fc2.weight.T
    b2 = jax.random.uniform(k4, (3,), jnp.float32, -lim2, lim2)      # fc2.bias
    return w1, b1, w2, b2


if __name__ == "__main__":
    key = jax.random.PRNGKey(0)
    kx, kp = jax.random.split(key)

    batch = 8
    x = jax.random.normal(kx, (batch, 4), jnp.float32)  # iris features: 4 per sample
    w1, b1, w2, b2 = init_params(kp)

    out = iris_forward(x, w1, b1, w2, b2)
    out = jax.block_until_ready(out)

    # Reference check in plain JAX (same math as the PyTorch forward).
    ref = jnp.maximum(x @ w1 + b1[None, :], 0.0) @ w2 + b2[None, :]
    assert out.shape == (batch, 3)
    assert jnp.allclose(out, ref, atol=1e-5, rtol=1e-5)

    print("KERNEL_OK")
</pallas_src>

<mosaic_0001>
module attributes {stable_mosaic.version = 11 : i64} {
  func.func @iris_mlp_kernel(%arg0: i32, %arg1: memref<4x128xf32, #tpu.memory_space<vmem>>, %arg2: memref<16x4xf32, #tpu.memory_space<vmem>>, %arg3: memref<16x1xf32, #tpu.memory_space<vmem>>, %arg4: memref<8x16xf32, #tpu.memory_space<vmem>>, %arg5: memref<8x1xf32, #tpu.memory_space<vmem>>, %arg6: memref<8x128xf32, #tpu.memory_space<vmem>>) attributes {dimension_semantics = [#tpu.dimension_semantics<parallel>], iteration_bounds = array<i64: 1>, scalar_prefetch = 0 : i64, scratch_operands = 0 : i64, tpu.core_type = #tpu.core_type<tc>, window_params = [{transform_indices = @transform_0, window_bounds = array<i64: 4, 128>}, {pipeline_mode = #tpu.pipeline_mode<synchronous>, transform_indices = @transform_1, window_bounds = array<i64: 16, 4>}, {pipeline_mode = #tpu.pipeline_mode<synchronous>, transform_indices = @transform_2, window_bounds = array<i64: 16, 1>}, {pipeline_mode = #tpu.pipeline_mode<synchronous>, transform_indices = @transform_3, window_bounds = array<i64: 8, 16>}, {pipeline_mode = #tpu.pipeline_mode<synchronous>, transform_indices = @transform_4, window_bounds = array<i64: 8, 1>}, {transform_indices = @transform_5, window_bounds = array<i64: 8, 128>}]} {
    %c0 = arith.constant 0 : index
    %c0_0 = arith.constant 0 : index
    %0 = vector.load %arg1[%c0, %c0_0] : memref<4x128xf32, #tpu.memory_space<vmem>>, vector<4x128xf32>
    %c0_1 = arith.constant 0 : index
    %c0_2 = arith.constant 0 : index
    %1 = vector.load %arg2[%c0_1, %c0_2] : memref<16x4xf32, #tpu.memory_space<vmem>>, vector<16x4xf32>
    %c0_3 = arith.constant 0 : index
    %c0_4 = arith.constant 0 : index
    %2 = vector.load %arg3[%c0_3, %c0_4] : memref<16x1xf32, #tpu.memory_space<vmem>>, vector<16x1xf32>
    %c0_5 = arith.constant 0 : index
    %c0_6 = arith.constant 0 : index
    %3 = vector.load %arg4[%c0_5, %c0_6] : memref<8x16xf32, #tpu.memory_space<vmem>>, vector<8x16xf32>
    %c0_7 = arith.constant 0 : index
    %c0_8 = arith.constant 0 : index
    %4 = vector.load %arg5[%c0_7, %c0_8] : memref<8x1xf32, #tpu.memory_space<vmem>>, vector<8x1xf32>
    %5 = vector.shape_cast %2 : vector<16x1xf32> to vector<16x1xf32>
    %6 = vector.broadcast %5 : vector<16x1xf32> to vector<16x128xf32>
    %7 = vector.extract_strided_slice %1 {offsets = [0, 0], sizes = [16, 1], strides = [1, 1]} : vector<16x4xf32> to vector<16x1xf32>
    %8 = vector.extract_strided_slice %0 {offsets = [0, 0], sizes = [1, 128], strides = [1, 1]} : vector<4x128xf32> to vector<1x128xf32>
    %9 = vector.broadcast %7 : vector<16x1xf32> to vector<16x128xf32>
    %10 = vector.broadcast %8 : vector<1x128xf32> to vector<16x128xf32>
    %11 = arith.mulf %9, %10 : vector<16x128xf32>
    %12 = arith.addf %6, %11 : vector<16x128xf32>
    %13 = vector.extract_strided_slice %1 {offsets = [0, 1], sizes = [16, 1], strides = [1, 1]} : vector<16x4xf32> to vector<16x1xf32>
    %14 = vector.extract_strided_slice %0 {offsets = [1, 0], sizes = [1, 128], strides = [1, 1]} : vector<4x128xf32> to vector<1x128xf32>
    %15 = vector.broadcast %13 : vector<16x1xf32> to vector<16x128xf32>
    %16 = vector.broadcast %14 : vector<1x128xf32> to vector<16x128xf32>
    %17 = arith.mulf %15, %16 : vector<16x128xf32>
    %18 = arith.addf %12, %17 : vector<16x128xf32>
    %19 = vector.extract_strided_slice %1 {offsets = [0, 2], sizes = [16, 1], strides = [1, 1]} : vector<16x4xf32> to vector<16x1xf32>
    %20 = vector.extract_strided_slice %0 {offsets = [2, 0], sizes = [1, 128], strides = [1, 1]} : vector<4x128xf32> to vector<1x128xf32>
    %21 = vector.broadcast %19 : vector<16x1xf32> to vector<16x128xf32>
    %22 = vector.broadcast %20 : vector<1x128xf32> to vector<16x128xf32>
    %23 = arith.mulf %21, %22 : vector<16x128xf32>
    %24 = arith.addf %18, %23 : vector<16x128xf32>
    %25 = vector.extract_strided_slice %1 {offsets = [0, 3], sizes = [16, 1], strides = [1, 1]} : vector<16x4xf32> to vector<16x1xf32>
    %26 = vector.extract_strided_slice %0 {offsets = [3, 0], sizes = [1, 128], strides = [1, 1]} : vector<4x128xf32> to vector<1x128xf32>
    %27 = vector.broadcast %25 : vector<16x1xf32> to vector<16x128xf32>
    %28 = vector.broadcast %26 : vector<1x128xf32> to vector<16x128xf32>
    %29 = arith.mulf %27, %28 : vector<16x128xf32>
    %30 = arith.addf %24, %29 : vector<16x128xf32>
    %cst = arith.constant 0.000000e+00 : f32
    %31 = vector.broadcast %cst : f32 to vector<16x128xf32>
    %32 = arith.maximumf %30, %31 : vector<16x128xf32>
    %cst_9 = arith.constant dense<0.000000e+00> : vector<8x128xf32>
    %33 = tpu.matmul %3, %32, %cst_9 {dimension_numbers = #tpu.dot_dimension_numbers<[1], [0], [0], [1], [0, 0, 1, 1], [], []>} : vector<8x16xf32>, vector<16x128xf32>, vector<8x128xf32> -> vector<8x128xf32>
    %34 = vector.broadcast %4 : vector<8x1xf32> to vector<8x128xf32>
    %35 = arith.addf %33, %34 : vector<8x128xf32>
    %c0_10 = arith.constant 0 : index
    %c0_11 = arith.constant 0 : index
    %36 = vector.load %arg6[%c0_10, %c0_11] : memref<8x128xf32, #tpu.memory_space<vmem>>, vector<8x128xf32>
    tpu.vector_store %arg6[%c0_10, %c0_11], %35 {strides = array<i32>} : memref<8x128xf32, #tpu.memory_space<vmem>>, vector<8x128xf32>,
    return
  }
  func.func @transform_0(%arg0: i32) -> (i32, i32) {
    %c0_i32 = arith.constant 0 : i32
    %c0_i32_0 = arith.constant 0 : i32
    return %c0_i32, %arg0 : i32, i32
  }
  func.func @transform_1(%arg0: i32) -> (i32, i32) {
    %c0_i32 = arith.constant 0 : i32
    %c0_i32_0 = arith.constant 0 : i32
    %c0_i32_1 = arith.constant 0 : i32
    return %c0_i32, %c0_i32_0 : i32, i32
  }
  func.func @transform_2(%arg0: i32) -> (i32, i32) {
    %c0_i32 = arith.constant 0 : i32
    %c0_i32_0 = arith.constant 0 : i32
    %c0_i32_1 = arith.constant 0 : i32
    return %c0_i32, %c0_i32_0 : i32, i32
  }
  func.func @transform_3(%arg0: i32) -> (i32, i32) {
    %c0_i32 = arith.constant 0 : i32
    %c0_i32_0 = arith.constant 0 : i32
    %c0_i32_1 = arith.constant 0 : i32
    return %c0_i32, %c0_i32_0 : i32, i32
  }
  func.func @transform_4(%arg0: i32) -> (i32, i32) {
    %c0_i32 = arith.constant 0 : i32
    %c0_i32_0 = arith.constant 0 : i32
    %c0_i32_1 = arith.constant 0 : i32
    return %c0_i32, %c0_i32_0 : i32, i32
  }
  func.func @transform_5(%arg0: i32) -> (i32, i32) {
    %c0_i32 = arith.constant 0 : i32
    %c0_i32_0 = arith.constant 0 : i32
    return %c0_i32, %arg0 : i32, i32
  }
}

</mosaic_0001>

<llo_original>
// kernel: tpu_custom_call.1
$region0: #{tpu_custom_call.1}
  #allocation0 [shape = 'u32[]', space=smem, size = 0x4, offset = 0x4, fixed_abs, tag = 'smem constant byte address 0x4 - core index']
  #allocation1 [shape = 'u32[72,128]{1,0:T(1,128)}', space=vmem, size = 0x9000, scoped, tag = 'internal scratch']
  %s0 = inlined_call_operand.vmem [shape: f32[4,128], index: 0, kind: input, shape index: {}]
  %s1 = inlined_call_operand.vmem [shape: f32[16,4], index: 1, kind: input, shape index: {}]
  %s2 = inlined_call_operand.vmem [shape: f32[16,1], index: 2, kind: input, shape index: {}]
  %s3 = inlined_call_operand.vmem [shape: f32[8,16], index: 3, kind: input, shape index: {}]
  %s4 = inlined_call_operand.vmem [shape: f32[8,1], index: 4, kind: input, shape index: {}]
  %s5 = inlined_call_operand.hbm [shape: f32[8,128], index: 5, kind: output, shape index: {}]
  %s6 = sld [smem:[#allocation0]]
  $region30: #{tpu_custom_call.1} parent=0
    _
  %s8 = ssub.s32 1, %s6
  %s9 = scalar_select 0, %s8, %s6
  $region1: #{tpu_custom_call.1} parent=0
    #allocation2 [shape = 'u8[4096]{0}', space=vmem, size = 0x1000, scoped, tag = 'output window, operand 0, single buffered']
    #allocation3 [shape = 's32[1]{0}', space=sflag, size = 0x4, scoped, tag = 'scoped memory for tpu_custom_call.1']
    %10 = vsyncpa [#allocation3], 0
    // Predicated region
    $region2: #{tpu_custom_call.1} parent=1 // pred_check
      _
    $region3: #{tpu_custom_call.1} parent=1 // pred_check_branch
      %12 = sbr.rel (0) target = $region5
    $region4: #{tpu_custom_call.1} parent=1 // pred_region
      _
    $region5: #{tpu_custom_call.1} parent=1 // pred_fallthru
      _
    // Predicated region
    $region6: #{tpu_custom_call.1} parent=1 // pred_check
      _
    $region7: #{tpu_custom_call.1} parent=1 // pred_check_branch
      %14 = sbr.rel (0) target = $region9
    $region8: #{tpu_custom_call.1} parent=1 // pred_region
      _
    $region9: #{tpu_custom_call.1} parent=1 // pred_fallthru
      _
    // Predicated region
    $region10: #{tpu_custom_call.1} parent=1 // pred_check
      _
    $region11: #{tpu_custom_call.1} parent=1 // pred_check_branch
      %16 = sbr.rel (0) target = $region13
    $region12: #{tpu_custom_call.1} parent=1 // pred_region
      _
    $region13: #{tpu_custom_call.1} parent=1 // pred_fallthru
      _
    // Predicated region
    $region14: #{tpu_custom_call.1} parent=1 // pred_check
      _
    $region15: #{tpu_custom_call.1} parent=1 // pred_check_branch
      %18 = sbr.rel (0) target = $region17
    $region16: #{tpu_custom_call.1} parent=1 // pred_region
      _
    $region17: #{tpu_custom_call.1} parent=1 // pred_fallthru
      _
    // Predicated region
    $region18: #{tpu_custom_call.1} parent=1 // pred_check
      _
    $region19: #{tpu_custom_call.1} parent=1 // pred_check_branch
      %20 = sbr.rel (0) target = $region21
    $region20: #{tpu_custom_call.1} parent=1 // pred_region
      _
    $region21: #{tpu_custom_call.1} parent=1 // pred_fallthru
      _
    %v21 = vld [vmem:[%s0] sm:$0xf]
    %v22 = vld [vmem:[%s1] sm:$0xff]
    %v23 = vld [vmem:[%s1 + $0x8] sm:$0xff]
    %v24 = vld [vmem:[%s2] sm:$0xff]
    %v25 = vld [vmem:[%s2 + $0x8] sm:$0xff]
    %v26 = vld [vmem:[%s3] sm:$0xff]
    %v27 = vld [vmem:[%s4] sm:$0xff]
    %29 = vset.pattern.permute.xlu0 0
    %30 = vperm.xlu0 %29, %v24
    %v31 = vpop.permute.xlu0 %30
    %34 = vset.pattern.permute.xlu0 0
    %35 = vperm.xlu0 %34, %v25
    %v36 = vpop.permute.xlu0 %35
    %39 = vset.pattern.permute.xlu0 0
    %40 = vperm.xlu0 %39, %v22
    %v41 = vpop.permute.xlu0 %40
    %44 = vset.pattern.permute.xlu0 0
    %45 = vperm.xlu0 %44, %v23
    %v46 = vpop.permute.xlu0 %45
    %v48 = vperm.slane %v21, 0
    %v49 = vmul.f32 %v41, %v48
    %v50 = vmul.f32 %v46, %v48
    %v51 = vadd.f32 %v31, %v49
    %v52 = vadd.f32 %v36, %v50
    %53 = vset.pattern.permute.xlu0 1
    %54 = vperm.xlu0 %53, %v22
    %v55 = vpop.permute.xlu0 %54
    %57 = vset.pattern.permute.xlu0 1
    %58 = vperm.xlu0 %57, %v23
    %v59 = vpop.permute.xlu0 %58
    %v61 = vperm.slane %v21, 1
    %v62 = vmul.f32 %v55, %v61
    %v63 = vmul.f32 %v59, %v61
    %v64 = vadd.f32 %v51, %v62
    %v65 = vadd.f32 %v52, %v63
    %66 = vset.pattern.permute.xlu0 2
    %67 = vperm.xlu0 %66, %v22
    %v68 = vpop.permute.xlu0 %67
    %70 = vset.pattern.permute.xlu0 2
    %71 = vperm.xlu0 %70, %v23
    %v72 = vpop.permute.xlu0 %71
    %v74 = vperm.slane %v21, 2
    %v75 = vmul.f32 %v68, %v74
    %v76 = vmul.f32 %v72, %v74
    %v77 = vadd.f32 %v64, %v75
    %v78 = vadd.f32 %v65, %v76
    %79 = vset.pattern.permute.xlu0 3
    %80 = vperm.xlu0 %79, %v22
    %v81 = vpop.permute.xlu0 %80
    %83 = vset.pattern.permute.xlu0 3
    %84 = vperm.xlu0 %83, %v23
    %v85 = vpop.permute.xlu0 %84
    %v87 = vperm.slane %v21, 3
    %v88 = vmul.f32 %v81, %v87
    %v89 = vmul.f32 %v85, %v87
    %v90 = vadd.f32 %v77, %v88
    %v91 = vadd.f32 %v78, %v89
    %v92 = vmax.f32 %v90, 0.0
    %v93 = vmax.f32 %v91, 0.0
    %95 = vset.pattern.permute.xlu0 0
    %96 = vperm.xlu0 %95, %v27
    %v97 = vpop.permute.xlu0 %96
    %vm99 = vcmask 130048
    %v101 = vsel %vm99, %v26, 0
    %103 = vmatpush.msra.mxu0 0.0
    %104 = vmatpush.msra.mxu0 0.0
    %105 = vmatpush.msra.mxu0 0.0
    %106 = vmatpush.msra.mxu0 0.0
    %107 = vmatpush.msra.mxu0 0.0
    %108 = vmatpush.msra.mxu0 0.0
    %109 = vmatpush.msra.mxu0 0.0
    %110 = vmatpush.msra.mxu0 0.0
    %111 = vmatpush.msra.mxu0 0.0
    %112 = vmatpush.msra.mxu0 0.0
    %113 = vmatpush.msra.mxu0 0.0
    %114 = vmatpush.msra.mxu0 0.0
    %115 = vmatpush.msra.mxu0 0.0
    %116 = vmatpush.msra.mxu0 0.0
    %117 = vmatpush.msra.mxu0 %v93
    %118 = vmatpush.msra.mxu0 %v92
    %119 = vmatmul.f32.gmra.mxu0 %v101
    %v120 = vpop.f32.mrf.mxu0
    %v121 = vadd.f32 %v97, %v120
    %122 = vdwg.mxu0
    %123 = vst [vmem:[#allocation2] sm:$0xff] %v121
    // Predicated region
    $region22: #{tpu_custom_call.1} parent=1 // pred_check
      _
    $region23: #{tpu_custom_call.1} parent=1 // pred_check_branch
      %125 = sbr.rel (0) target = $region25
    $region24: #{tpu_custom_call.1} parent=1 // pred_region
      %127 = vsyncadd [#allocation3], 0
      %s129 = sshll.u32 [#allocation2], 4
      %s130 = int_to_ptr.vmem [resolvable:$true] %s129
      %s131 = sshll.u32 %s5, 4
      %s132 = int_to_ptr.hbm [resolvable:$true] %s131
      %134 = dma.vmem_to_hbm [thread:$0]  %s130, 128, %s132, [#allocation3]
    $region25: #{tpu_custom_call.1} parent=1 // pred_fallthru
      _
    // Predicated region
    $region26: #{tpu_custom_call.1} parent=1 // pred_check
      _
    $region27: #{tpu_custom_call.1} parent=1 // pred_check_branch
      %136 = sbr.rel (0) target = $region29
    $region28: #{tpu_custom_call.1} parent=1 // pred_region
      %138 = dma.done [#allocation3], 128
    $region29: #{tpu_custom_call.1} parent=1 // pred_fallthru
      _
    %139 = vsyncpa [#allocation3], 1

</llo_original>
